<compile_context>
chip_gen: v7x
topology: tpu7x:2x2x1
jax: 0.10.0
libtpu: 0.0.40
codegen_flags: <defaults>
</compile_context>

<pallas_src>
import functools

import jax
import jax.numpy as jnp
from jax import lax
from jax.experimental import pallas as pl
from jax.experimental.pallas import tpu as pltpu


# Contract the last dim of both operands (i.e. A @ B.T without an explicit
# transpose -- the MXU consumes both tiles in native layout).
_DOT_DIMS = (((1,), (1,)), ((), ()))

_LANE = 128
_DEFAULT_SMALL_PATH_BYTES = 4 << 20   # per streamed (b, f) array


def _round_up(x, m):
    return ((x + m - 1) // m) * m


def _vmem_budget_bytes():
    """Per-generation budget for streamed tiles (leaves headroom for v7x 64 MiB)."""
    try:
        cap = int(pltpu.get_tpu_info().vmem_capacity_bytes)
    except Exception:
        cap = 64 << 20                      # conservative: v7x physical VMEM
    return max(16 << 20, min(cap // 2 - (4 << 20), 48 << 20))


def _pick_tf(b, f, itemsize, extra_bytes, max_tile_lanes=None):
    """Lane-aligned F tile: 2 streamed inputs x 2 buffers x (b,tf) + f32 acc."""
    budget = max(_vmem_budget_bytes() - extra_bytes, 8 << 20)
    per_lane = b * (4 * itemsize + 4)       # 2 inputs * 2 bufs * itemsize + f32 acc
    tf = (budget // per_lane) // _LANE * _LANE
    tf = max(_LANE, tf)
    tf = min(tf, _round_up(f, _LANE))
    if max_tile_lanes is not None:
        tf = min(tf, max(_LANE, (max_tile_lanes // _LANE) * _LANE))
    return int(tf)


# --------------------------------------------------------------------------
# Penalty epilogue (shared by the small and tiled combined kernels)
# --------------------------------------------------------------------------
def _penalty_epilogue(gram, emb, *, b, f_true, sim_thr, dist_thr, eps):
    """O(B^2) epilogue: cosine-sim matrix + Gram-identity pairwise distances."""
    # Matches torch: emb / (||emb|| + eps); O(B) divisions, once per active step.
    norm = jnp.sqrt(jnp.sum(emb * emb, axis=1, keepdims=True))
    emb_n = emb * (1.0 / (norm + jnp.float32(eps)))
    sim = lax.dot_general(emb_n, emb_n, _DOT_DIMS,
                          precision=lax.Precision.HIGHEST,
                          preferred_element_type=jnp.float32)          # (B, B)

    row = lax.broadcasted_iota(jnp.int32, (b, b), 0)
    col = lax.broadcasted_iota(jnp.int32, (b, b), 1)
    eye = row == col

    # dist_sq[i, j] = (G_ii + G_jj - 2 G_ij) / F ; diag(G) via masked reductions.
    diag = jnp.where(eye, gram, 0.0)
    rs_col = jnp.sum(diag, axis=1, keepdims=True)                      # (B, 1)
    rs_row = jnp.sum(diag, axis=0, keepdims=True)                      # (1, B)
    dist_sq = jnp.maximum(rs_col + rs_row - 2.0 * gram, 0.0) / jnp.float32(f_true)

    penalize = ((sim > jnp.float32(sim_thr))
                & (dist_sq > jnp.float32(dist_thr * dist_thr))
                & jnp.logical_not(eye))
    pairs = (sim - jnp.float32(sim_thr)) * (
        jnp.sqrt(dist_sq + jnp.float32(eps)) - jnp.float32(dist_thr))

    cnt = jnp.sum(penalize.astype(jnp.float32))
    psum = jnp.sum(jnp.where(penalize, pairs, 0.0))
    return jnp.where(cnt > 0.0, psum / jnp.maximum(cnt, 1.0), 0.0)


# --------------------------------------------------------------------------
# Kernels: small (single full-extent block, grid=(1,)) variants
# --------------------------------------------------------------------------
def _mse_small_kernel(out_ref, tgt_ref, loss_ref, *, n_elems):
    diff = out_ref[...].astype(jnp.float32) - tgt_ref[...].astype(jnp.float32)
    loss_ref[0] = jnp.sum(diff * diff) / jnp.float32(n_elems)


def _combined_small_kernel(out_ref, tgt_ref, emb_ref, loss_ref, *,
                           b, f_true, lam, sim_thr, dist_thr, eps):
    out = out_ref[...].astype(jnp.float32)
    tgt = tgt_ref[...].astype(jnp.float32)
    diff = out - tgt
    mse = jnp.sum(diff * diff) / jnp.float32(b * f_true)

    # Gram on the MXU; HIGHEST because dist_sq identity is cancellation-sensitive.
    gram = lax.dot_general(tgt, tgt, _DOT_DIMS,
                           precision=lax.Precision.HIGHEST,
                           preferred_element_type=jnp.float32)

    emb = emb_ref[...].astype(jnp.float32)
    penalty = _penalty_epilogue(gram, emb, b=b, f_true=f_true,
                                sim_thr=sim_thr, dist_thr=dist_thr, eps=eps)
    loss_ref[0] = mse + jnp.float32(lam) * penalty


# --------------------------------------------------------------------------
# Kernels: tiled streaming variants (grid over F, last tile masked in-kernel)
# --------------------------------------------------------------------------
def _mse_tiled_kernel(out_ref, tgt_ref, loss_ref, acc_sc, *, f_true, tf, n_elems):
    k = pl.program_id(0)

    @pl.when(k == 0)
    def _init():
        acc_sc[...] = jnp.zeros_like(acc_sc)

    out = out_ref[...].astype(jnp.float32)
    tgt = tgt_ref[...].astype(jnp.float32)
    # Mask the (possibly partial) last tile: global column index < f_true.
    col = lax.broadcasted_iota(jnp.int32, out.shape, 1) + k * tf
    diff = jnp.where(col < f_true, out - tgt, 0.0)
    acc_sc[...] += diff * diff          # pure VPU elementwise accumulation

    @pl.when(k == pl.num_programs(0) - 1)
    def _finalize():
        # Single cross-lane reduce, only once.
        loss_ref[0] = jnp.sum(acc_sc[...]) / jnp.float32(n_elems)


def _combined_tiled_kernel(out_ref, tgt_ref, emb_ref, loss_ref, acc_sc, gram_sc,
                           *, b, f_true, tf, lam, sim_thr, dist_thr, eps):
    k = pl.program_id(0)

    @pl.when(k == 0)
    def _init():
        acc_sc[...] = jnp.zeros_like(acc_sc)
        gram_sc[...] = jnp.zeros_like(gram_sc)

    out = out_ref[...].astype(jnp.float32)      # (B, TF)
    tgt = tgt_ref[...].astype(jnp.float32)      # (B, TF)

    col = lax.broadcasted_iota(jnp.int32, tgt.shape, 1) + k * tf
    valid = col < f_true
    tgt_m = jnp.where(valid, tgt, 0.0)
    diff = jnp.where(valid, out - tgt, 0.0)

    # ---- MSE elementwise partial accumulation (VPU only) ------------------
    acc_sc[...] += diff * diff

    # ---- Gram partial on the MXU:  G += tgt_tile @ tgt_tile.T -------------
    gram_sc[...] += lax.dot_general(tgt_m, tgt_m, _DOT_DIMS,
                                    precision=lax.Precision.HIGHEST,
                                    preferred_element_type=jnp.float32)

    @pl.when(k == pl.num_programs(0) - 1)
    def _finalize():
        mse = jnp.sum(acc_sc[...]) / jnp.float32(b * f_true)
        # Embedding block is grid-invariant (index_map -> (0, 0)): DMA'd once.
        emb = emb_ref[...].astype(jnp.float32)
        penalty = _penalty_epilogue(gram_sc[...], emb, b=b, f_true=f_true,
                                    sim_thr=sim_thr, dist_thr=dist_thr, eps=eps)
        loss_ref[0] = mse + jnp.float32(lam) * penalty


# --------------------------------------------------------------------------
# pallas_call builders (cached per static configuration)
# --------------------------------------------------------------------------
def _clamp_limit(usage_bytes):
    return int(min(usage_bytes + (8 << 20), 56 << 20))


@functools.lru_cache(maxsize=None)
def _build_mse_small(b, f, itemsize):
    kernel = functools.partial(_mse_small_kernel, n_elems=b * f)
    return pl.pallas_call(
        kernel,
        out_shape=jax.ShapeDtypeStruct((1,), jnp.float32),
        grid=(1,),
        in_specs=[pl.BlockSpec((b, f), lambda i: (0, 0)),
                  pl.BlockSpec((b, f), lambda i: (0, 0))],
        out_specs=pl.BlockSpec(memory_space=pltpu.MemorySpace.SMEM),
        compiler_params=pltpu.CompilerParams(
            dimension_semantics=("arbitrary",),
            vmem_limit_bytes=_clamp_limit(4 * b * f * itemsize)),
    )


@functools.lru_cache(maxsize=None)
def _build_combined_small(b, f, e, itemsize, emb_itemsize,
                          lam, sim_thr, dist_thr, eps):
    kernel = functools.partial(_combined_small_kernel, b=b, f_true=f, lam=lam,
                               sim_thr=sim_thr, dist_thr=dist_thr, eps=eps)
    usage = 4 * b * f * itemsize + 2 * b * e * emb_itemsize + 8 * b * b * 4
    return pl.pallas_call(
        kernel,
        out_shape=jax.ShapeDtypeStruct((1,), jnp.float32),
        grid=(1,),
        in_specs=[pl.BlockSpec((b, f), lambda i: (0, 0)),       # outputs
                  pl.BlockSpec((b, f), lambda i: (0, 0)),       # targets
                  pl.BlockSpec((b, e), lambda i: (0, 0))],      # embeddings
        out_specs=pl.BlockSpec(memory_space=pltpu.MemorySpace.SMEM),
        compiler_params=pltpu.CompilerParams(
            dimension_semantics=("arbitrary",),
            vmem_limit_bytes=_clamp_limit(usage)),
    )


@functools.lru_cache(maxsize=None)
def _build_mse_tiled(b, f, tf, itemsize):
    grid = (pl.cdiv(f, tf),)
    kernel = functools.partial(_mse_tiled_kernel, f_true=f, tf=tf, n_elems=b * f)
    usage = 4 * b * tf * itemsize + 4 * b * tf
    return pl.pallas_call(
        kernel,
        out_shape=jax.ShapeDtypeStruct((1,), jnp.float32),
        grid=grid,
        in_specs=[pl.BlockSpec((b, tf), lambda k: (0, k)),
                  pl.BlockSpec((b, tf), lambda k: (0, k))],
        out_specs=pl.BlockSpec(memory_space=pltpu.MemorySpace.SMEM),
        scratch_shapes=[pltpu.VMEM((b, tf), jnp.float32)],      # MSE partials
        compiler_params=pltpu.CompilerParams(
            dimension_semantics=("arbitrary",),
            vmem_limit_bytes=_clamp_limit(usage)),
    )


@functools.lru_cache(maxsize=None)
def _build_combined_tiled(b, f, tf, e, itemsize, emb_itemsize,
                          lam, sim_thr, dist_thr, eps):
    grid = (pl.cdiv(f, tf),)
    kernel = functools.partial(_combined_tiled_kernel, b=b, f_true=f, tf=tf,
                               lam=lam, sim_thr=sim_thr,
                               dist_thr=dist_thr, eps=eps)
    usage = (4 * b * tf * itemsize + 4 * b * tf
             + 2 * b * e * emb_itemsize + 8 * b * b * 4)
    return pl.pallas_call(
        kernel,
        out_shape=jax.ShapeDtypeStruct((1,), jnp.float32),
        grid=grid,
        in_specs=[pl.BlockSpec((b, tf), lambda k: (0, k)),      # outputs
                  pl.BlockSpec((b, tf), lambda k: (0, k)),      # targets
                  pl.BlockSpec((b, e), lambda k: (0, 0))],      # embeddings (resident)
        out_specs=pl.BlockSpec(memory_space=pltpu.MemorySpace.SMEM),
        scratch_shapes=[pltpu.VMEM((b, tf), jnp.float32),       # MSE partials
                        pltpu.VMEM((b, b), jnp.float32)],       # target Gram acc
        compiler_params=pltpu.CompilerParams(
            dimension_semantics=("arbitrary",),
            vmem_limit_bytes=_clamp_limit(usage)),
    )


# --------------------------------------------------------------------------
# Stateful wrapper mirroring the torch module's step bookkeeping
# --------------------------------------------------------------------------
class CombinedLossPallas:
    def __init__(self, lambda_penalty=1.0, sim_threshold=0.7,
                 dist_threshold=0.5, eps=1e-8, skipping_steps=5,
                 activate_after=1000, logging_freq=50,
                 small_path_max_bytes=_DEFAULT_SMALL_PATH_BYTES,
                 max_tile_lanes=None):
        self.lambda_penalty = lambda_penalty
        self.sim_threshold = sim_threshold
        self.dist_threshold = dist_threshold
        self.eps = eps
        self.skipping_steps = skipping_steps
        self.activate_after = activate_after
        self.logging_freq = logging_freq
        self.step_counter = 0
        # Dispatch/tiling knobs (max_tile_lanes is mainly for testing the
        # streaming path at small shapes).
        self.small_path_max_bytes = small_path_max_bytes
        self.max_tile_lanes = max_tile_lanes

    def __call__(self, outputs, targets, embeddings=None):
        self.step_counter += 1
        b = outputs.shape[0]

        out2 = outputs.reshape(b, -1)       # native dtype; cast in-kernel
        tgt2 = targets.reshape(b, -1)
        f = out2.shape[1]
        itemsize = jnp.dtype(out2.dtype).itemsize

        active = (embeddings is not None
                  and self.step_counter >= self.activate_after
                  and self.step_counter % self.skipping_steps == 0
                  and b > 1 and self.lambda_penalty > 0)

        if not active:
            # Common case: pure MSE reduction, no embedding DMA at all.
            if b * f * itemsize <= self.small_path_max_bytes:
                return _build_mse_small(b, f, itemsize)(out2, tgt2)[0]
            tf = _pick_tf(b, f, itemsize, extra_bytes=0,
                          max_tile_lanes=self.max_tile_lanes)
            return _build_mse_tiled(b, f, tf, itemsize)(out2, tgt2)[0]

        emb2 = embeddings.reshape(b, -1)
        e = emb2.shape[1]
        emb_itemsize = jnp.dtype(emb2.dtype).itemsize

        if (b * f * itemsize <= self.small_path_max_bytes
                and b * e * emb_itemsize <= self.small_path_max_bytes):
            call = _build_combined_small(b, f, e, itemsize, emb_itemsize,
                                         float(self.lambda_penalty),
                                         float(self.sim_threshold),
                                         float(self.dist_threshold),
                                         float(self.eps))
            return call(out2, tgt2, emb2)[0]

        extra = 2 * b * e * emb_itemsize + 4 * b * b
        tf = _pick_tf(b, f, itemsize, extra_bytes=extra,
                      max_tile_lanes=self.max_tile_lanes)
        call = _build_combined_tiled(b, f, tf, e, itemsize, emb_itemsize,
                                     float(self.lambda_penalty),
                                     float(self.sim_threshold),
                                     float(self.dist_threshold),
                                     float(self.eps))
        return call(out2, tgt2, emb2)[0]


# --------------------------------------------------------------------------
# Pure-JAX reference of the torch forward (for verification)
# --------------------------------------------------------------------------
def _reference_loss(outputs, targets, embeddings, active, lam=1.0,
                    sim_thr=0.7, dist_thr=0.5, eps=1e-8):
    mse = jnp.mean((outputs - targets) ** 2)
    if not active:
        return mse
    b = embeddings.shape[0]
    emb = embeddings.reshape(b, -1)
    tgt = targets.reshape(b, -1)
    emb_n = emb / (jnp.linalg.norm(emb, axis=1, keepdims=True) + eps)
    sim = jnp.matmul(emb_n, emb_n.T, precision=lax.Precision.HIGHEST)
    dist_sq = jnp.mean((tgt[:, None, :] - tgt[None, :, :]) ** 2, axis=-1)
    mask = ~jnp.eye(b, dtype=bool)
    pen_mask = (sim > sim_thr) & (dist_sq > dist_thr ** 2) & mask
    pairs = (sim - sim_thr) * (jnp.sqrt(dist_sq + eps) - dist_thr)
    cnt = jnp.sum(pen_mask)
    penalty = jnp.where(cnt > 0,
                        jnp.sum(jnp.where(pen_mask, pairs, 0.0)) /
                        jnp.maximum(cnt, 1),
                        0.0)
    return mse + lam * penalty


if __name__ == "__main__":
    key = jax.random.PRNGKey(0)
    k1, k2, k3, k4 = jax.random.split(key, 4)

    # f = L*D = 160 (deliberately NOT lane-aligned -> exercises in-kernel
    # masking of the partial last F-tile on the streaming path).
    B, L, D, H = 8, 8, 20, 32
    outputs = jax.random.normal(k1, (B, L, D), dtype=jnp.float32)
    targets = jax.random.normal(k2, (B, L, D), dtype=jnp.float32)
    # Embeddings built so rows are highly similar (cosine sim > 0.7) while
    # targets differ, exercising the penalized branch.
    base = jax.random.normal(k3, (L, H), dtype=jnp.float32)
    embeddings = base[None, :, :] + 0.1 * jax.random.normal(
        k4, (B, L, H), dtype=jnp.float32)

    ref_inactive = _reference_loss(outputs, targets, embeddings, active=False)
    ref_active = _reference_loss(outputs, targets, embeddings, active=True)

    # ---- fast path: full-extent blocks, grid=(1,), no padding -------------
    loss_mod = CombinedLossPallas(lambda_penalty=1.0, sim_threshold=0.7,
                                  dist_threshold=0.5, eps=1e-8,
                                  skipping_steps=1, activate_after=2)
    l_inactive = loss_mod(outputs, targets, embeddings)      # step 1: MSE only
    jax.block_until_ready(l_inactive)
    assert jnp.allclose(l_inactive, ref_inactive, rtol=1e-4, atol=1e-6), (
        l_inactive, ref_inactive)
    l_active = loss_mod(outputs, targets, embeddings)        # step 2: + penalty
    jax.block_until_ready(l_active)
    assert jnp.allclose(l_active, ref_active, rtol=1e-3, atol=1e-5), (
        l_active, ref_active)

    # ---- streaming path (forced tiny tiles: 2 F-tiles, last one partial) --
    loss_mod_tiled = CombinedLossPallas(lambda_penalty=1.0, sim_threshold=0.7,
                                        dist_threshold=0.5, eps=1e-8,
                                        skipping_steps=1, activate_after=2,
                                        small_path_max_bytes=0,
                                        max_tile_lanes=128)
    t_inactive = loss_mod_tiled(outputs, targets, embeddings)
    jax.block_until_ready(t_inactive)
    assert jnp.allclose(t_inactive, ref_inactive, rtol=1e-4, atol=1e-6), (
        t_inactive, ref_inactive)
    t_active = loss_mod_tiled(outputs, targets, embeddings)
    jax.block_until_ready(t_active)
    assert jnp.allclose(t_active, ref_active, rtol=1e-3, atol=1e-5), (
        t_active, ref_active)

    print("KERNEL_OK")
</pallas_src>

<mosaic_0001>
module attributes {stable_mosaic.version = 11 : i64} {
  func.func @_mse_small_kernel(%arg0: i32, %arg1: memref<8x160xf32, #tpu.memory_space<vmem>>, %arg2: memref<8x160xf32, #tpu.memory_space<vmem>>, %arg3: memref<1xf32, #tpu.memory_space<smem>>) attributes {dimension_semantics = [#tpu.dimension_semantics<arbitrary>], iteration_bounds = array<i64: 1>, scalar_prefetch = 0 : i64, scratch_operands = 0 : i64, tpu.core_type = #tpu.core_type<tc>, window_params = [{pipeline_mode = #tpu.pipeline_mode<synchronous>, transform_indices = @transform_0, window_bounds = array<i64: 8, 160>}, {pipeline_mode = #tpu.pipeline_mode<synchronous>, transform_indices = @transform_1, window_bounds = array<i64: 8, 160>}, {transform_indices = @transform_2, window_bounds = array<i64: 1>}]} {
    %c0 = arith.constant 0 : index
    %c0_0 = arith.constant 0 : index
    %0 = vector.load %arg1[%c0, %c0_0] : memref<8x160xf32, #tpu.memory_space<vmem>>, vector<8x160xf32>
    %c0_1 = arith.constant 0 : index
    %c0_2 = arith.constant 0 : index
    %1 = vector.load %arg2[%c0_1, %c0_2] : memref<8x160xf32, #tpu.memory_space<vmem>>, vector<8x160xf32>
    %2 = arith.subf %0, %1 : vector<8x160xf32>
    %3 = arith.mulf %2, %2 : vector<8x160xf32>
    %4 = vector.shape_cast %3 : vector<8x160xf32> to vector<1x8x160xf32>
    %cst = arith.constant dense<0.000000e+00> : vector<1xf32>
    %5 = vector.multi_reduction <add>, %4, %cst [1, 2] : vector<1x8x160xf32> to vector<1xf32>
    %6 = vector.shape_cast %5 : vector<1xf32> to vector<1x1x1xf32>
    %7 = vector.extract %6[0, 0, 0] : f32 from vector<1x1x1xf32>
    %cst_3 = arith.constant 1.280000e+03 : f32
    %8 = arith.divf %7, %cst_3 : f32
    %c0_4 = arith.constant 0 : index
    %9 = memref.load %arg3[%c0_4] : memref<1xf32, #tpu.memory_space<smem>>
    memref.store %8, %arg3[%c0_4] : memref<1xf32, #tpu.memory_space<smem>>
    return
  }
  func.func @transform_0(%arg0: i32) -> (i32, i32) {
    %c0_i32 = arith.constant 0 : i32
    %c0_i32_0 = arith.constant 0 : i32
    %c0_i32_1 = arith.constant 0 : i32
    return %c0_i32, %c0_i32_0 : i32, i32
  }
  func.func @transform_1(%arg0: i32) -> (i32, i32) {
    %c0_i32 = arith.constant 0 : i32
    %c0_i32_0 = arith.constant 0 : i32
    %c0_i32_1 = arith.constant 0 : i32
    return %c0_i32, %c0_i32_0 : i32, i32
  }
  func.func @transform_2(%arg0: i32) -> i32 {
    %c0_i32 = arith.constant 0 : i32
    %c0_i32_0 = arith.constant 0 : i32
    return %c0_i32 : i32
  }
}

</mosaic_0001>

<llo_original>
// kernel: tpu_custom_call.1
$region0: #{tpu_custom_call.1}
  #allocation0 [shape = 'u32[]', space=smem, size = 0x4, offset = 0x4, fixed_abs, tag = 'smem constant byte address 0x4 - core index']
  #allocation1 [shape = 'u32[144,128]{1,0:T(1,128)}', space=vmem, size = 0x12000, scoped, tag = 'internal scratch']
  %s0 = inlined_call_operand.hbm [shape: f32[8,160], index: 0, kind: input, shape index: {}]
  %s1 = inlined_call_operand.hbm [shape: f32[8,160], index: 1, kind: input, shape index: {}]
  %s2 = inlined_call_operand.hbm [shape: f32[1], index: 2, kind: output, shape index: {}]
  %s3 = sld [smem:[#allocation0]]
  $region26: #{tpu_custom_call.1} parent=0
    _
  %s5 = ssub.s32 1, %s3
  %s6 = scalar_select 0, %s5, %s3
  $region1: #{tpu_custom_call.1} parent=0
    #allocation2 [shape = 'u8[8192]{0}', space=vmem, size = 0x2000, scoped, tag = 'input window, operand 0, single buffered']
    #allocation3 [shape = 's32[1]{0}', space=sflag, size = 0x4, scoped, tag = 'scoped memory for tpu_custom_call.1']
    #allocation4 [shape = 's32[1]{0}', space=sflag, size = 0x4, scoped, tag = 'scoped memory for tpu_custom_call.1']
    #allocation5 [shape = 'u8[8192]{0}', space=vmem, size = 0x2000, scoped, tag = 'input window, operand 1, single buffered']
    #allocation6 [shape = 's32[1]{0}', space=sflag, size = 0x4, scoped, tag = 'scoped memory for tpu_custom_call.1']
    #allocation7 [shape = 'u8[512]{0}', space=smem, size = 0x200, scoped, tag = 'output window, operand 0, single buffered']
    %7 = vsyncpa [#allocation3], 0
    %8 = vsyncpa [#allocation6], 0
    %9 = vsyncpa [#allocation4], 0
    // Predicated region
    $region2: #{tpu_custom_call.1} parent=1 // pred_check
      _
    $region3: #{tpu_custom_call.1} parent=1 // pred_check_branch
      %11 = sbr.rel (0) target = $region5
    $region4: #{tpu_custom_call.1} parent=1 // pred_region
      %s13 = ssub.s32 256, 256
      %14 = vsyncadd [#allocation3], %s13
      %s16 = sshll.u32 [#allocation2], 4
      %s17 = int_to_ptr.vmem [resolvable:$true] %s16
      %19 = dma.hbm_to_vmem [thread:$0]  %s0, 256, %s17, [#allocation3]
    $region5: #{tpu_custom_call.1} parent=1 // pred_fallthru
      _
    // Predicated region
    $region6: #{tpu_custom_call.1} parent=1 // pred_check
      _
    $region7: #{tpu_custom_call.1} parent=1 // pred_check_branch
      %21 = sbr.rel (0) target = $region9
    $region8: #{tpu_custom_call.1} parent=1 // pred_region
      %s23 = ssub.s32 256, 256
      %24 = vsyncadd [#allocation6], %s23
      %s26 = sshll.u32 [#allocation5], 4
      %s27 = int_to_ptr.vmem [resolvable:$true] %s26
      %29 = dma.hbm_to_vmem [thread:$0]  %s1, 256, %s27, [#allocation6]
    $region9: #{tpu_custom_call.1} parent=1 // pred_fallthru
      _
    // Predicated region
    $region10: #{tpu_custom_call.1} parent=1 // pred_check
      _
    $region11: #{tpu_custom_call.1} parent=1 // pred_check_branch
      %31 = sbr.rel (0) target = $region13
    $region12: #{tpu_custom_call.1} parent=1 // pred_region
      %32 = dma.done [#allocation3], 256
    $region13: #{tpu_custom_call.1} parent=1 // pred_fallthru
      _
    // Predicated region
    $region14: #{tpu_custom_call.1} parent=1 // pred_check
      _
    $region15: #{tpu_custom_call.1} parent=1 // pred_check_branch
      %34 = sbr.rel (0) target = $region17
    $region16: #{tpu_custom_call.1} parent=1 // pred_region
      %35 = dma.done [#allocation6], 256
    $region17: #{tpu_custom_call.1} parent=1 // pred_fallthru
      _
    %v36 = vld [vmem:[#allocation2] sm:$0xff]
    %v37 = vld [vmem:[#allocation2 + $0x8] sm:$0xff]
    %v38 = vld [vmem:[#allocation5] sm:$0xff]
    %v39 = vld [vmem:[#allocation5 + $0x8] sm:$0xff]
    %v40 = vsub.f32 %v36, %v38
    %v41 = vsub.f32 %v37, %v39
    %v42 = vmul.f32 %v40, %v40
    %v43 = vmul.f32 %v41, %v41
    %vm44 = vcmask 261120
    %v45 = vsel %vm44, %v43, 0.0
    %v46 = vadd.f32 %v42, %v45
    %47 = vadd.xlane.f32.xlu0 %v46
    %v48 = vpop.xlane.xlu0 %47
    %v49 = vrot.slane %v48, 4
    %v50 = vadd.f32 %v48, %v49
    %v51 = vrot.slane %v50, 2
    %v52 = vadd.f32 %v50, %v51
    %v53 = vrot.slane %v52, 1
    %v54 = vadd.f32 %v52, %v53
    %s55 = vtos %v54
    %v56 = vrcp.pop 1280.0
    %s57 = vtos %v56
    %s58 = smul.f32 %s55, %s57
    %s59 = scalar_lea.smem [#allocation7], 0
    %60 = sst [smem:[%s59]] %s58
    // Predicated region
    $region18: #{tpu_custom_call.1} parent=1 // pred_check
      _
    $region19: #{tpu_custom_call.1} parent=1 // pred_check_branch
      %62 = sbr.rel (0) target = $region21
    $region20: #{tpu_custom_call.1} parent=1 // pred_region
      %s64 = ssub.s32 16, 16
      %65 = vsyncadd [#allocation4], %s64
      %68 = dma.smem_to_hbm [#allocation7], 16, %s2, [#allocation4]
    $region21: #{tpu_custom_call.1} parent=1 // pred_fallthru
      _
    // Predicated region
    $region22: #{tpu_custom_call.1} parent=1 // pred_check
      _
    $region23: #{tpu_custom_call.1} parent=1 // pred_check_branch
      %70 = sbr.rel (0) target = $region25
    $region24: #{tpu_custom_call.1} parent=1 // pred_region
      %71 = dma.done [#allocation4], 16
    $region25: #{tpu_custom_call.1} parent=1 // pred_fallthru
      _
    %72 = sfence
    %73 = vsyncpa [#allocation3], 1
    %74 = vsyncpa [#allocation6], 1
    %75 = vsyncpa [#allocation4], 1

</llo_original>
